<compile_context>
chip_gen: v7x
topology: tpu7x:2x2x1
jax: 0.10.0
libtpu: 0.0.40
codegen_flags: <defaults>
</compile_context>

<pallas_src>
from functools import lru_cache

import jax
import jax.numpy as jnp
import numpy as np
from jax.experimental import pallas as pl
from jax.experimental.pallas import tpu as pltpu


# ---------------------------------------------------------------------------
# Kernel
# ---------------------------------------------------------------------------
def spatial_attention_kernel(x_ref, m_ref, o_ref):
    """x_ref: (N, C, HW) f32   m_ref: (2*HW, HW) bf16   o_ref: (N, C, HW) f32."""
    x = x_ref[...]                                           # (N, C, HW), lane-dense

    # Per-image channel statistics (sublane reductions over C).
    mean = jnp.mean(x, axis=1)                               # (N, HW)
    mx = jnp.max(x, axis=1)                                  # (N, HW)

    # Lane-concat the two stats -> one batched MXU matmul against the fused
    # dense 'same'-conv operator (bf16 operands, f32 accumulation).
    s = jnp.concatenate([mean, mx], axis=1).astype(m_ref.dtype)   # (N, 2*HW)
    z = jnp.dot(s, m_ref[...], preferred_element_type=jnp.float32)  # (N, HW)

    # sigmoid(z) = 0.5 * (1 + tanh(z/2)) -- a single EUP transcendental.
    att = 0.5 * (1.0 + jnp.tanh(0.5 * z))                    # (N, HW)

    # Broadcast over channels (sublanes) and store lane-dense (aliases x in HBM).
    o_ref[...] = x * att[:, None, :]


# ---------------------------------------------------------------------------
# Host-side helpers
# ---------------------------------------------------------------------------
@lru_cache(maxsize=None)
def _conv_tap_indices(H, W, K):
    """Static scatter indices for folding a (2,K,K) 'same' conv into a dense
    (2*HW, HW) operator.  Cached per (H, W, K); weight-independent."""
    P = (K - 1) // 2
    HW = H * W
    rows, cols, wc, wy, wx = [], [], [], [], []
    for c in range(2):
        for ho in range(H):
            for wo in range(W):
                j = ho * W + wo
                for dy in range(K):
                    hi = ho + dy - P
                    if hi < 0 or hi >= H:
                        continue
                    for dx in range(K):
                        wi = wo + dx - P
                        if wi < 0 or wi >= W:
                            continue
                        rows.append(c * HW + hi * W + wi)
                        cols.append(j)
                        wc.append(c)
                        wy.append(dy)
                        wx.append(dx)
    to = lambda a: np.asarray(a, dtype=np.int32)
    return to(rows), to(cols), to(wc), to(wy), to(wx)


def _build_conv_operator(w, H, W):
    """Fused dense operator M (2*HW, HW), bf16, built with a jittable scatter.

    conv_out[n, j] = [mean_flat | max_flat][n, :] @ M[:, j]   (cross-correlation,
    zero-padded 'same', matching nn.Conv2d(2, 1, K, padding=P, bias=False)).
    """
    K = w.shape[-1]
    HW = H * W
    rows, cols, wc, wy, wx = _conv_tap_indices(H, W, K)
    vals = w[wc, wy, wx].astype(jnp.float32)                 # gather from traced weights
    M = jnp.zeros((2 * HW, HW), jnp.float32).at[rows, cols].set(vals)
    return M.astype(jnp.bfloat16)


@jax.jit
def spatial_attention_forward(x_nchw, w):
    """x_nchw: (N, C, H, W) float32; w: (2, K, K) conv weight (out=1, in=2)."""
    N, C, H, W = x_nchw.shape
    HW = H * W

    conv_mat = _build_conv_operator(w, H, W)                 # (2*HW, HW) bf16
    x_flat = x_nchw.reshape(N, C, HW).astype(jnp.float32)    # free, contiguous reshape

    out_flat = pl.pallas_call(
        spatial_attention_kernel,
        out_shape=jax.ShapeDtypeStruct((N, C, HW), jnp.float32),
        grid=(1,),                                           # whole batch in one step
        in_specs=[
            pl.BlockSpec((N, C, HW), lambda i: (0, 0, 0)),   # x (whole batch)
            pl.BlockSpec((2 * HW, HW), lambda i: (0, 0)),    # fused conv operator
        ],
        out_specs=pl.BlockSpec((N, C, HW), lambda i: (0, 0, 0)),
        input_output_aliases={0: 0},                         # out aliases x in HBM
        compiler_params=pltpu.CompilerParams(
            dimension_semantics=("arbitrary",)),
    )(x_flat, conv_mat)

    return out_flat.reshape(N, C, H, W)


def spatial_attention_ref(x, w):
    """Pure-JAX reference (XLA conv) for a correctness check."""
    K = w.shape[-1]
    P = (K - 1) // 2
    mean = jnp.mean(x, axis=1, keepdims=True)
    mx = jnp.max(x, axis=1, keepdims=True)
    s = jnp.concatenate([mean, mx], axis=1)                  # (N, 2, H, W)
    att = jax.lax.conv_general_dilated(
        s, w[None].astype(jnp.float32), window_strides=(1, 1),
        padding=[(P, P), (P, P)],
        dimension_numbers=("NCHW", "OIHW", "NCHW"))
    return x * jax.nn.sigmoid(att)


# ---------------------------------------------------------------------------
if __name__ == "__main__":
    key = jax.random.PRNGKey(0)
    k_x, k_w = jax.random.split(key)

    N, C, H, W = 2, 4, 16, 16
    KSIZE = 7                        # kernel_size=7 -> padding=3 ('same')

    x = jax.random.normal(k_x, (N, C, H, W), jnp.float32)
    w = jax.random.normal(k_w, (2, KSIZE, KSIZE), jnp.float32) / np.sqrt(2 * KSIZE * KSIZE)

    out = spatial_attention_forward(x, w)
    out = jax.block_until_ready(out)

    ref = spatial_attention_ref(x, w)
    assert out.shape == (N, C, H, W)
    np.testing.assert_allclose(np.asarray(out), np.asarray(ref),
                               rtol=2e-2, atol=2e-2)
    print("KERNEL_OK")
</pallas_src>

<mosaic_0001>
module attributes {stable_mosaic.version = 11 : i64} {
  func.func @spatial_attention_kernel(%arg0: i32, %arg1: memref<2x4x256xf32, #tpu.memory_space<vmem>>, %arg2: memref<512x256xbf16, #tpu.memory_space<vmem>>, %arg3: memref<2x4x256xf32, #tpu.memory_space<vmem>>) attributes {dimension_semantics = [#tpu.dimension_semantics<arbitrary>], iteration_bounds = array<i64: 1>, scalar_prefetch = 0 : i64, scratch_operands = 0 : i64, tpu.core_type = #tpu.core_type<tc>, window_params = [{pipeline_mode = #tpu.pipeline_mode<synchronous>, transform_indices = @transform_0, window_bounds = array<i64: 2, 4, 256>}, {pipeline_mode = #tpu.pipeline_mode<synchronous>, transform_indices = @transform_1, window_bounds = array<i64: 512, 256>}, {pipeline_mode = #tpu.pipeline_mode<synchronous>, transform_indices = @transform_2, window_bounds = array<i64: 2, 4, 256>}]} {
    %c0 = arith.constant 0 : index
    %c0_0 = arith.constant 0 : index
    %c0_1 = arith.constant 0 : index
    %0 = vector.load %arg1[%c0, %c0_0, %c0_1] : memref<2x4x256xf32, #tpu.memory_space<vmem>>, vector<2x4x256xf32>
    %cst = arith.constant dense<0.000000e+00> : vector<2x256xf32>
    %1 = vector.multi_reduction <add>, %0, %cst [1] : vector<2x4x256xf32> to vector<2x256xf32>
    %cst_2 = arith.constant 4.000000e+00 : f32
    %2 = vector.broadcast %cst_2 : f32 to vector<2x256xf32>
    %3 = arith.divf %1, %2 : vector<2x256xf32>
    %cst_3 = arith.constant dense<0xFF800000> : vector<2x256xf32>
    %4 = vector.multi_reduction <maximumf>, %0, %cst_3 [1] : vector<2x4x256xf32> to vector<2x256xf32>
    %5 = tpu.concatenate %3, %4 in 1 : vector<2x256xf32>, vector<2x256xf32> -> vector<2x512xf32>
    %6 = arith.truncf %5 : vector<2x512xf32> to vector<2x512xbf16>
    %c0_4 = arith.constant 0 : index
    %c0_5 = arith.constant 0 : index
    %7 = vector.load %arg2[%c0_4, %c0_5] : memref<512x256xbf16, #tpu.memory_space<vmem>>, vector<512x256xbf16>
    %cst_6 = arith.constant dense<0.000000e+00> : vector<2x256xf32>
    %8 = tpu.matmul %6, %7, %cst_6 {dimension_numbers = #tpu.dot_dimension_numbers<[1], [0], [0], [1], [0, 0, 1, 1], [], []>} : vector<2x512xbf16>, vector<512x256xbf16>, vector<2x256xf32> -> vector<2x256xf32>
    %cst_7 = arith.constant 5.000000e-01 : f32
    %9 = vector.broadcast %cst_7 : f32 to vector<2x256xf32>
    %10 = arith.mulf %9, %8 : vector<2x256xf32>
    %11 = math.tanh %10 : vector<2x256xf32>
    %cst_8 = arith.constant 1.000000e+00 : f32
    %12 = vector.broadcast %cst_8 : f32 to vector<2x256xf32>
    %13 = arith.addf %12, %11 : vector<2x256xf32>
    %cst_9 = arith.constant 5.000000e-01 : f32
    %14 = vector.broadcast %cst_9 : f32 to vector<2x256xf32>
    %15 = arith.mulf %14, %13 : vector<2x256xf32>
    %16 = vector.shape_cast %15 : vector<2x256xf32> to vector<2x1x256xf32>
    %17 = vector.broadcast %16 : vector<2x1x256xf32> to vector<2x4x256xf32>
    %18 = arith.mulf %0, %17 : vector<2x4x256xf32>
    %c0_10 = arith.constant 0 : index
    %c0_11 = arith.constant 0 : index
    %c0_12 = arith.constant 0 : index
    %19 = vector.load %arg3[%c0_10, %c0_11, %c0_12] : memref<2x4x256xf32, #tpu.memory_space<vmem>>, vector<2x4x256xf32>
    tpu.vector_store %arg3[%c0_10, %c0_11, %c0_12], %18 {strides = array<i32>} : memref<2x4x256xf32, #tpu.memory_space<vmem>>, vector<2x4x256xf32>,
    return
  }
  func.func @transform_0(%arg0: i32) -> (i32, i32, i32) {
    %c0_i32 = arith.constant 0 : i32
    %c0_i32_0 = arith.constant 0 : i32
    %c0_i32_1 = arith.constant 0 : i32
    %c0_i32_2 = arith.constant 0 : i32
    return %c0_i32, %c0_i32_0, %c0_i32_1 : i32, i32, i32
  }
  func.func @transform_1(%arg0: i32) -> (i32, i32) {
    %c0_i32 = arith.constant 0 : i32
    %c0_i32_0 = arith.constant 0 : i32
    %c0_i32_1 = arith.constant 0 : i32
    return %c0_i32, %c0_i32_0 : i32, i32
  }
  func.func @transform_2(%arg0: i32) -> (i32, i32, i32) {
    %c0_i32 = arith.constant 0 : i32
    %c0_i32_0 = arith.constant 0 : i32
    %c0_i32_1 = arith.constant 0 : i32
    %c0_i32_2 = arith.constant 0 : i32
    return %c0_i32, %c0_i32_0, %c0_i32_1 : i32, i32, i32
  }
}

</mosaic_0001>

<llo_original>
// kernel: spatial_attention_forward.1
$region0: #{spatial_attention_forward.1}
  #allocation0 [shape = 'u32[]', space=smem, size = 0x4, offset = 0x4, fixed_abs, tag = 'smem constant byte address 0x4 - core index']
  #allocation1 [shape = 'u32[144,128]{1,0:T(1,128)}', space=vmem, size = 0x12000, scoped, tag = 'internal scratch']
  %s0 = inlined_call_operand.vmem [shape: f32[2,4,256], index: 0, kind: input, shape index: {}, may-alias: {0,2}]
  %s1 = inlined_call_operand.vmem [shape: bf16[512,256], index: 1, kind: input, shape index: {}]
  %s2 = inlined_call_operand.vmem [shape: f32[2,4,256], index: 2, kind: output, shape index: {}, may-alias: {0,2}]
  %s3 = sld [smem:[#allocation0]]
  $region18: #{spatial_attention_forward.1} parent=0
    _
  %s5 = ssub.s32 1, %s3
  %s6 = scalar_select 0, %s5, %s3
  // Predicated region
  $region2: #{spatial_attention_forward.1} parent=0 // pred_check
    _
  $region3: #{spatial_attention_forward.1} parent=0 // pred_check_branch
    %8 = sbr.rel (0) target = $region5
  $region4: #{spatial_attention_forward.1} parent=0 // pred_region
    _
  $region5: #{spatial_attention_forward.1} parent=0 // pred_fallthru
    _
  // Predicated region
  $region6: #{spatial_attention_forward.1} parent=0 // pred_check
    _
  $region7: #{spatial_attention_forward.1} parent=0 // pred_check_branch
    %10 = sbr.rel (0) target = $region9
  $region8: #{spatial_attention_forward.1} parent=0 // pred_region
    _
  $region9: #{spatial_attention_forward.1} parent=0 // pred_fallthru
    _
  %v11 = vld [vmem:[%s0] sm:$0xff]
  %v12 = vld [vmem:[%s0 + $0x8] sm:$0xff]
  %v15 = vcombine.high %v11, %v11
  %v16 = vcombine.high %v12, %v12
  %vm19 = vcmask 1043456
  %v20 = vsel %vm19, %v11, 0.0
  %v21 = vrot.slane %v20, 4
  %v22 = vadd.f32 %v20, %v21
  %v23 = vrot.slane %v22, 2
  %v24 = vadd.f32 %v22, %v23
  %v25 = vrot.slane %v24, 1
  %v26 = vadd.f32 %v24, %v25
  %v27 = vsel %vm19, %v15, 0.0
  %v28 = vrot.slane %v27, 4
  %v29 = vadd.f32 %v27, %v28
  %v30 = vrot.slane %v29, 2
  %v31 = vadd.f32 %v29, %v30
  %v32 = vrot.slane %v31, 1
  %v33 = vadd.f32 %v31, %v32
  %v34 = vsel %vm19, %v12, 0.0
  %v35 = vrot.slane %v34, 4
  %v36 = vadd.f32 %v34, %v35
  %v37 = vrot.slane %v36, 2
  %v38 = vadd.f32 %v36, %v37
  %v39 = vrot.slane %v38, 1
  %v40 = vadd.f32 %v38, %v39
  %v41 = vsel %vm19, %v16, 0.0
  %v42 = vrot.slane %v41, 4
  %v43 = vadd.f32 %v41, %v42
  %v44 = vrot.slane %v43, 2
  %v45 = vadd.f32 %v43, %v44
  %v46 = vrot.slane %v45, 1
  %v47 = vadd.f32 %v45, %v46
  %v48 = vrcp.pop 4.0
  %v49 = vmul.f32 %v26, %v48
  %v50 = vmul.f32 %v33, %v48
  %v51 = vmul.f32 %v40, %v48
  %v52 = vmul.f32 %v47, %v48
  %v53 = vsel %vm19, %v11, -inf
  %v54 = vrot.slane %v53, 4
  %v55 = vmax.f32 %v53, %v54
  %v56 = vrot.slane %v55, 2
  %v57 = vmax.f32 %v55, %v56
  %v58 = vrot.slane %v57, 1
  %v59 = vmax.f32 %v57, %v58
  %v60 = vsel %vm19, %v15, -inf
  %v61 = vrot.slane %v60, 4
  %v62 = vmax.f32 %v60, %v61
  %v63 = vrot.slane %v62, 2
  %v64 = vmax.f32 %v62, %v63
  %v65 = vrot.slane %v64, 1
  %v66 = vmax.f32 %v64, %v65
  %v67 = vsel %vm19, %v12, -inf
  %v68 = vrot.slane %v67, 4
  %v69 = vmax.f32 %v67, %v68
  %v70 = vrot.slane %v69, 2
  %v71 = vmax.f32 %v69, %v70
  %v72 = vrot.slane %v71, 1
  %v73 = vmax.f32 %v71, %v72
  %v74 = vsel %vm19, %v16, -inf
  %v75 = vrot.slane %v74, 4
  %v76 = vmax.f32 %v74, %v75
  %v77 = vrot.slane %v76, 2
  %v78 = vmax.f32 %v76, %v77
  %v79 = vrot.slane %v78, 1
  %v80 = vmax.f32 %v78, %v79
  %vm85 = vcmask 1041409
  %v86 = vsel %vm85, %v51, %v49
  %v87 = vsel %vm85, %v52, %v50
  %v94 = vsel %vm85, %v73, %v59
  %v95 = vsel %vm85, %v80, %v66
  %v98 = vpack.c.bf16 %v86, %v86
  %v99 = vpack.c.bf16 %v87, %v87
  %v100 = vpack.c.bf16 %v94, %v94
  %v101 = vpack.c.bf16 %v95, %v95
  %v102 = vld [vmem:[%s1] sm:$0xff]
  %v103 = vld [vmem:[%s1 + $0x8] sm:$0xff]
  %v104 = vld [vmem:[%s1 + $0x10] sm:$0xff]
  %v105 = vld [vmem:[%s1 + $0x18] sm:$0xff]
  %v106 = vld [vmem:[%s1 + $0x20] sm:$0xff]
  %v107 = vld [vmem:[%s1 + $0x28] sm:$0xff]
  %v108 = vld [vmem:[%s1 + $0x30] sm:$0xff]
  %v109 = vld [vmem:[%s1 + $0x38] sm:$0xff]
  %v110 = vld [vmem:[%s1 + $0x40] sm:$0xff]
  %v111 = vld [vmem:[%s1 + $0x48] sm:$0xff]
  %v112 = vld [vmem:[%s1 + $0x50] sm:$0xff]
  %v113 = vld [vmem:[%s1 + $0x58] sm:$0xff]
  %v114 = vld [vmem:[%s1 + $0x60] sm:$0xff]
  %v115 = vld [vmem:[%s1 + $0x68] sm:$0xff]
  %v116 = vld [vmem:[%s1 + $0x70] sm:$0xff]
  %v117 = vld [vmem:[%s1 + $0x78] sm:$0xff]
  %v118 = vld [vmem:[%s1 + $0x80] sm:$0xff]
  %v119 = vld [vmem:[%s1 + $0x88] sm:$0xff]
  %v120 = vld [vmem:[%s1 + $0x90] sm:$0xff]
  %v121 = vld [vmem:[%s1 + $0x98] sm:$0xff]
  %v122 = vld [vmem:[%s1 + $0xa0] sm:$0xff]
  %v123 = vld [vmem:[%s1 + $0xa8] sm:$0xff]
  %v124 = vld [vmem:[%s1 + $0xb0] sm:$0xff]
  %v125 = vld [vmem:[%s1 + $0xb8] sm:$0xff]
  %v126 = vld [vmem:[%s1 + $0xc0] sm:$0xff]
  %v127 = vld [vmem:[%s1 + $0xc8] sm:$0xff]
  %v128 = vld [vmem:[%s1 + $0xd0] sm:$0xff]
  %v129 = vld [vmem:[%s1 + $0xd8] sm:$0xff]
  %v130 = vld [vmem:[%s1 + $0xe0] sm:$0xff]
  %v131 = vld [vmem:[%s1 + $0xe8] sm:$0xff]
  %v132 = vld [vmem:[%s1 + $0xf0] sm:$0xff]
  %v133 = vld [vmem:[%s1 + $0xf8] sm:$0xff]
  %v134 = vld [vmem:[%s1 + $0x100] sm:$0xff]
  %v135 = vld [vmem:[%s1 + $0x108] sm:$0xff]
  %v136 = vld [vmem:[%s1 + $0x110] sm:$0xff]
  %v137 = vld [vmem:[%s1 + $0x118] sm:$0xff]
  %v138 = vld [vmem:[%s1 + $0x120] sm:$0xff]
  %v139 = vld [vmem:[%s1 + $0x128] sm:$0xff]
  %v140 = vld [vmem:[%s1 + $0x130] sm:$0xff]
  %v141 = vld [vmem:[%s1 + $0x138] sm:$0xff]
  %v142 = vld [vmem:[%s1 + $0x140] sm:$0xff]
  %v143 = vld [vmem:[%s1 + $0x148] sm:$0xff]
  %v144 = vld [vmem:[%s1 + $0x150] sm:$0xff]
  %v145 = vld [vmem:[%s1 + $0x158] sm:$0xff]
  %v146 = vld [vmem:[%s1 + $0x160] sm:$0xff]
  %v147 = vld [vmem:[%s1 + $0x168] sm:$0xff]
  %v148 = vld [vmem:[%s1 + $0x170] sm:$0xff]
  %v149 = vld [vmem:[%s1 + $0x178] sm:$0xff]
  %v150 = vld [vmem:[%s1 + $0x180] sm:$0xff]
  %v151 = vld [vmem:[%s1 + $0x188] sm:$0xff]
  %v152 = vld [vmem:[%s1 + $0x190] sm:$0xff]
  %v153 = vld [vmem:[%s1 + $0x198] sm:$0xff]
  %v154 = vld [vmem:[%s1 + $0x1a0] sm:$0xff]
  %v155 = vld [vmem:[%s1 + $0x1a8] sm:$0xff]
  %v156 = vld [vmem:[%s1 + $0x1b0] sm:$0xff]
  %v157 = vld [vmem:[%s1 + $0x1b8] sm:$0xff]
  %v158 = vld [vmem:[%s1 + $0x1c0] sm:$0xff]
  %v159 = vld [vmem:[%s1 + $0x1c8] sm:$0xff]
  %v160 = vld [vmem:[%s1 + $0x1d0] sm:$0xff]
  %v161 = vld [vmem:[%s1 + $0x1d8] sm:$0xff]
  %v162 = vld [vmem:[%s1 + $0x1e0] sm:$0xff]
  %v163 = vld [vmem:[%s1 + $0x1e8] sm:$0xff]
  %v164 = vld [vmem:[%s1 + $0x1f0] sm:$0xff]
  %v165 = vld [vmem:[%s1 + $0x1f8] sm:$0xff]
  %v230 = vunpack.c.l.b16 %v102
  %v231 = vunpack.c.h.b16 %v102
  %v232 = vunpack.c.l.b16 %v103
  %v233 = vunpack.c.h.b16 %v103
  %v234 = vunpack.c.l.b16 %v104
  %v235 = vunpack.c.h.b16 %v104
  %v236 = vunpack.c.l.b16 %v105
  %v237 = vunpack.c.h.b16 %v105
  %v238 = vunpack.c.l.b16 %v106
  %v239 = vunpack.c.h.b16 %v106
  %v240 = vunpack.c.l.b16 %v107
  %v241 = vunpack.c.h.b16 %v107
  %v242 = vunpack.c.l.b16 %v108
  %v243 = vunpack.c.h.b16 %v108
  %v244 = vunpack.c.l.b16 %v109
  %v245 = vunpack.c.h.b16 %v109
  %v246 = vunpack.c.l.b16 %v110
  %v247 = vunpack.c.h.b16 %v110
  %v248 = vunpack.c.l.b16 %v111
  %v249 = vunpack.c.h.b16 %v111
  %v250 = vunpack.c.l.b16 %v112
  %v251 = vunpack.c.h.b16 %v112
  %v252 = vunpack.c.l.b16 %v113
  %v253 = vunpack.c.h.b16 %v113
  %v254 = vunpack.c.l.b16 %v114
  %v255 = vunpack.c.h.b16 %v114
  %v256 = vunpack.c.l.b16 %v115
  %v257 = vunpack.c.h.b16 %v115
  %v258 = vunpack.c.l.b16 %v116
  %v259 = vunpack.c.h.b16 %v116
  %v260 = vunpack.c.l.b16 %v117
  %v261 = vunpack.c.h.b16 %v117
  %v262 = vunpack.c.l.b16 %v118
  %v263 = vunpack.c.h.b16 %v118
  %v264 = vunpack.c.l.b16 %v119
  %v265 = vunpack.c.h.b16 %v119
  %v266 = vunpack.c.l.b16 %v120
  %v267 = vunpack.c.h.b16 %v120
  %v268 = vunpack.c.l.b16 %v121
  %v269 = vunpack.c.h.b16 %v121
  %v270 = vunpack.c.l.b16 %v122
  %v271 = vunpack.c.h.b16 %v122
  %v272 = vunpack.c.l.b16 %v123
  %v273 = vunpack.c.h.b16 %v123
  %v274 = vunpack.c.l.b16 %v124
  %v275 = vunpack.c.h.b16 %v124
  %v276 = vunpack.c.l.b16 %v125
  %v277 = vunpack.c.h.b16 %v125
  %v278 = vunpack.c.l.b16 %v126
  %v279 = vunpack.c.h.b16 %v126
  %v280 = vunpack.c.l.b16 %v127
  %v281 = vunpack.c.h.b16 %v127
  %v282 = vunpack.c.l.b16 %v128
  %v283 = vunpack.c.h.b16 %v128
  %v284 = vunpack.c.l.b16 %v129
  %v285 = vunpack.c.h.b16 %v129
  %v286 = vunpack.c.l.b16 %v130
  %v287 = vunpack.c.h.b16 %v130
  %v288 = vunpack.c.l.b16 %v131
  %v289 = vunpack.c.h.b16 %v131
  %v290 = vunpack.c.l.b16 %v132
  %v291 = vunpack.c.h.b16 %v132
  %v292 = vunpack.c.l.b16 %v133
  %v293 = vunpack.c.h.b16 %v133
  %v294 = vunpack.c.l.b16 %v134
  %v295 = vunpack.c.h.b16 %v134
  %v296 = vunpack.c.l.b16 %v135
  %v297 = vunpack.c.h.b16 %v135
  %v298 = vunpack.c.l.b16 %v136
  %v299 = vunpack.c.h.b16 %v136
  %v300 = vunpack.c.l.b16 %v137
  %v301 = vunpack.c.h.b16 %v137
  %v302 = vunpack.c.l.b16 %v138
  %v303 = vunpack.c.h.b16 %v138
  %v304 = vunpack.c.l.b16 %v139
  %v305 = vunpack.c.h.b16 %v139
  %v306 = vunpack.c.l.b16 %v140
  %v307 = vunpack.c.h.b16 %v140
  %v308 = vunpack.c.l.b16 %v141
  %v309 = vunpack.c.h.b16 %v141
  %v310 = vunpack.c.l.b16 %v142
  %v311 = vunpack.c.h.b16 %v142
  %v312 = vunpack.c.l.b16 %v143
  %v313 = vunpack.c.h.b16 %v143
  %v314 = vunpack.c.l.b16 %v144
  %v315 = vunpack.c.h.b16 %v144
  %v316 = vunpack.c.l.b16 %v145
  %v317 = vunpack.c.h.b16 %v145
  %v318 = vunpack.c.l.b16 %v146
  %v319 = vunpack.c.h.b16 %v146
  %v320 = vunpack.c.l.b16 %v147
  %v321 = vunpack.c.h.b16 %v147
  %v322 = vunpack.c.l.b16 %v148
  %v323 = vunpack.c.h.b16 %v148
  %v324 = vunpack.c.l.b16 %v149
  %v325 = vunpack.c.h.b16 %v149
  %v326 = vunpack.c.l.b16 %v150
  %v327 = vunpack.c.h.b16 %v150
  %v328 = vunpack.c.l.b16 %v151
  %v329 = vunpack.c.h.b16 %v151
  %v330 = vunpack.c.l.b16 %v152
  %v331 = vunpack.c.h.b16 %v152
  %v332 = vunpack.c.l.b16 %v153
  %v333 = vunpack.c.h.b16 %v153
  %v334 = vunpack.c.l.b16 %v154
  %v335 = vunpack.c.h.b16 %v154
  %v336 = vunpack.c.l.b16 %v155
  %v337 = vunpack.c.h.b16 %v155
  %v338 = vunpack.c.l.b16 %v156
  %v339 = vunpack.c.h.b16 %v156
  %v340 = vunpack.c.l.b16 %v157
  %v341 = vunpack.c.h.b16 %v157
  %v342 = vunpack.c.l.b16 %v158
  %v343 = vunpack.c.h.b16 %v158
  %v344 = vunpack.c.l.b16 %v159
  %v345 = vunpack.c.h.b16 %v159
  %v346 = vunpack.c.l.b16 %v160
  %v347 = vunpack.c.h.b16 %v160
  %v348 = vunpack.c.l.b16 %v161
  %v349 = vunpack.c.h.b16 %v161
  %v350 = vunpack.c.l.b16 %v162
  %v351 = vunpack.c.h.b16 %v162
  %v352 = vunpack.c.l.b16 %v163
  %v353 = vunpack.c.h.b16 %v163
  %v354 = vunpack.c.l.b16 %v164
  %v355 = vunpack.c.h.b16 %v164
  %v356 = vunpack.c.l.b16 %v165
  %v357 = vunpack.c.h.b16 %v165
  %v358 = vpack.c.b16 %v232, %v230
  %v359 = vpack.c.b16 %v233, %v231
  %v360 = vpack.c.b16 %v236, %v234
  %v361 = vpack.c.b16 %v237, %v235
  %v362 = vpack.c.b16 %v240, %v238
  %v363 = vpack.c.b16 %v241, %v239
  %v364 = vpack.c.b16 %v244, %v242
  %v365 = vpack.c.b16 %v245, %v243
  %v366 = vpack.c.b16 %v248, %v246
  %v367 = vpack.c.b16 %v249, %v247
  %v368 = vpack.c.b16 %v252, %v250
  %v369 = vpack.c.b16 %v253, %v251
  %v370 = vpack.c.b16 %v256, %v254
  %v371 = vpack.c.b16 %v257, %v255
  %v372 = vpack.c.b16 %v260, %v258
  %v373 = vpack.c.b16 %v261, %v259
  %v374 = vpack.c.b16 %v264, %v262
  %v375 = vpack.c.b16 %v265, %v263
  %v376 = vpack.c.b16 %v268, %v266
  %v377 = vpack.c.b16 %v269, %v267
  %v378 = vpack.c.b16 %v272, %v270
  %v379 = vpack.c.b16 %v273, %v271
  %v380 = vpack.c.b16 %v276, %v274
  %v381 = vpack.c.b16 %v277, %v275
  %v382 = vpack.c.b16 %v280, %v278
  %v383 = vpack.c.b16 %v281, %v279
  %v384 = vpack.c.b16 %v284, %v282
  %v385 = vpack.c.b16 %v285, %v283
  %v386 = vpack.c.b16 %v288, %v286
  %v387 = vpack.c.b16 %v289, %v287
  %v388 = vpack.c.b16 %v292, %v290
  %v389 = vpack.c.b16 %v293, %v291
  %v390 = vpack.c.b16 %v296, %v294
  %v391 = vpack.c.b16 %v297, %v295
  %v392 = vpack.c.b16 %v300, %v298
  %v393 = vpack.c.b16 %v301, %v299
  %v394 = vpack.c.b16 %v304, %v302
  %v395 = vpack.c.b16 %v305, %v303
  %v396 = vpack.c.b16 %v308, %v306
  %v397 = vpack.c.b16 %v309, %v307
  %v398 = vpack.c.b16 %v312, %v310
  %v399 = vpack.c.b16 %v313, %v311
  %v400 = vpack.c.b16 %v316, %v314
  %v401 = vpack.c.b16 %v317, %v315
  %v402 = vpack.c.b16 %v320, %v318
  %v403 = vpack.c.b16 %v321, %v319
  %v404 = vpack.c.b16 %v324, %v322
  %v405 = vpack.c.b16 %v325, %v323
  %v406 = vpack.c.b16 %v328, %v326
  %v407 = vpack.c.b16 %v329, %v327
  %v408 = vpack.c.b16 %v332, %v330
  %v409 = vpack.c.b16 %v333, %v331
  %v410 = vpack.c.b16 %v336, %v334
  %v411 = vpack.c.b16 %v337, %v335
  %v412 = vpack.c.b16 %v340, %v338
  %v413 = vpack.c.b16 %v341, %v339
  %v414 = vpack.c.b16 %v344, %v342
  %v415 = vpack.c.b16 %v345, %v343
  %v416 = vpack.c.b16 %v348, %v346
  %v417 = vpack.c.b16 %v349, %v347
  %v418 = vpack.c.b16 %v352, %v350
  %v419 = vpack.c.b16 %v353, %v351
  %v420 = vpack.c.b16 %v356, %v354
  %v421 = vpack.c.b16 %v357, %v355
  %486 = vmatprep.subr.bf16.mxu0 %v359
  %487 = vmatpush1.bf16.msra.mxu0 %v358
  %488 = vmatprep.subr.bf16.mxu0 %v361
  %489 = vmatpush1.bf16.msra.mxu0 %v360
  %490 = vmatprep.subr.bf16.mxu0 %v363
  %491 = vmatpush1.bf16.msra.mxu0 %v362
  %492 = vmatprep.subr.bf16.mxu0 %v365
  %493 = vmatpush1.bf16.msra.mxu0 %v364
  %494 = vmatprep.subr.bf16.mxu0 %v367
  %495 = vmatpush1.bf16.msra.mxu0 %v366
  %496 = vmatprep.subr.bf16.mxu0 %v369
  %497 = vmatpush1.bf16.msra.mxu0 %v368
  %498 = vmatprep.subr.bf16.mxu0 %v371
  %499 = vmatpush1.bf16.msra.mxu0 %v370
  %500 = vmatprep.subr.bf16.mxu0 %v373
  %501 = vmatpush1.bf16.msra.mxu0 %v372
  %502 = vmatprep.subr.bf16.mxu0 %v375
  %503 = vmatpush1.bf16.msra.mxu0 %v374
  %504 = vmatprep.subr.bf16.mxu0 %v377
  %505 = vmatpush1.bf16.msra.mxu0 %v376
  %506 = vmatprep.subr.bf16.mxu0 %v379
  %507 = vmatpush1.bf16.msra.mxu0 %v378
  %508 = vmatprep.subr.bf16.mxu0 %v381
  %509 = vmatpush1.bf16.msra.mxu0 %v380
  %510 = vmatprep.subr.bf16.mxu0 %v383
  %511 = vmatpush1.bf16.msra.mxu0 %v382
  %512 = vmatprep.subr.bf16.mxu0 %v385
  %513 = vmatpush1.bf16.msra.mxu0 %v384
  %514 = vmatprep.subr.bf16.mxu0 %v387
  %515 = vmatpush1.bf16.msra.mxu0 %v386
  %516 = vmatprep.subr.bf16.mxu0 %v389
  %517 = vmatpush1.bf16.msra.mxu0 %v388
  %518 = vmatprep.mubr.bf16.mxu0 %v99
  %519 = vmatmul.mubr.bf16.gmra.mrb[0].mxu0 %v98
  %v520 = vpop.f32.mrb[0].mxu0
  %v521 = vadd.f32 0.0, %v520
  %v522 = vpop.f32.mrb[0].mxu0
  %v523 = vadd.f32 0.0, %v522
  %v524 = vpop.f32.mrb[0].mxu0
  %v525 = vpop.f32.mrb[0].mxu0
  %526 = vdwg.mxu0
  %527 = vmatprep.subr.bf16.mxu0 %v391
  %528 = vmatpush1.bf16.msra.mxu0 %v390
  %529 = vmatprep.subr.bf16.mxu0 %v393
  %530 = vmatpush1.bf16.msra.mxu0 %v392
  %531 = vmatprep.subr.bf16.mxu0 %v395
  %532 = vmatpush1.bf16.msra.mxu0 %v394
  %533 = vmatprep.subr.bf16.mxu0 %v397
  %534 = vmatpush1.bf16.msra.mxu0 %v396
  %535 = vmatprep.subr.bf16.mxu0 %v399
  %536 = vmatpush1.bf16.msra.mxu0 %v398
  %537 = vmatprep.subr.bf16.mxu0 %v401
  %538 = vmatpush1.bf16.msra.mxu0 %v400
  %539 = vmatprep.subr.bf16.mxu0 %v403
  %540 = vmatpush1.bf16.msra.mxu0 %v402
  %541 = vmatprep.subr.bf16.mxu0 %v405
  %542 = vmatpush1.bf16.msra.mxu0 %v404
  %543 = vmatprep.subr.bf16.mxu0 %v407
  %544 = vmatpush1.bf16.msra.mxu0 %v406
  %545 = vmatprep.subr.bf16.mxu0 %v409
  %546 = vmatpush1.bf16.msra.mxu0 %v408
  %547 = vmatprep.subr.bf16.mxu0 %v411
  %548 = vmatpush1.bf16.msra.mxu0 %v410
  %549 = vmatprep.subr.bf16.mxu0 %v413
  %550 = vmatpush1.bf16.msra.mxu0 %v412
  %551 = vmatprep.subr.bf16.mxu0 %v415
  %552 = vmatpush1.bf16.msra.mxu0 %v414
  %553 = vmatprep.subr.bf16.mxu0 %v417
  %554 = vmatpush1.bf16.msra.mxu0 %v416
  %555 = vmatprep.subr.bf16.mxu0 %v419
  %556 = vmatpush1.bf16.msra.mxu0 %v418
  %557 = vmatprep.subr.bf16.mxu0 %v421
  %558 = vmatpush1.bf16.msra.mxu0 %v420
  %559 = vmatprep.mubr.bf16.mxu0 %v101
  %560 = vmatmul.mubr.bf16.gmra.mrb[0].mxu0 %v100
  %v561 = vpop.f32.mrb[0].mxu0
  %v562 = vadd.f32 %v521, %v561
  %v563 = vpop.f32.mrb[0].mxu0
  %v564 = vadd.f32 %v523, %v563
  %v565 = vpop.f32.mrb[0].mxu0
  %v566 = vpop.f32.mrb[0].mxu0
  %567 = vdwg.mxu0
  %v568 = vmul.f32 %v562, 0.5
  %v569 = vmul.f32 %v564, 0.5
  %v570 = vtanh.pop %v568
  %v571 = vtanh.pop %v569
  %v572 = vadd.f32 %v570, 1.0
  %v573 = vadd.f32 %v571, 1.0
  %v574 = vmul.f32 %v572, 0.5
  %v575 = vmul.f32 %v573, 0.5
  %v578 = vcombine.low %v574, %v575
  %v580 = vunpack.c.l.s4 1966171168
  %v581 = vunpack.c.0.s8 %v580
  %v582 = vlaneseq
  %v583 = vshrl.u32 %v582, 7
  %v584 = vsub.s32 %v581, %v583
  %v585 = vrot.slane %v578, %v584
  %v586 = vcombine.high %v585, %v585
  %v588 = vunpack.c.l.s4 1966171168
  %v589 = vunpack.c.0.s8 %v588
  %v590 = vlaneseq
  %v591 = vshrl.u32 %v590, 7
  %v592 = vsub.s32 %v589, %v591
  %v593 = vrot.slane %v585, %v592
  %v595 = vunpack.c.l.s4 1966171168
  %v596 = vunpack.c.0.s8 %v595
  %v597 = vlaneseq
  %v598 = vshrl.u32 %v597, 7
  %v599 = vsub.s32 %v596, %v598
  %v600 = vrot.slane %v586, %v599
  %v601 = vlaneseq
  %v602 = vshrl.u32 %v601, 7
  %v603 = vsub.s32 0, %v602
  %v604 = vrot.slane %v593, %v603
  %v605 = vlaneseq
  %v606 = vshrl.u32 %v605, 7
  %v607 = vsub.s32 1, %v606
  %v608 = vrot.slane %v593, %v607
  %v609 = vlaneseq
  %v610 = vshrl.u32 %v609, 7
  %v611 = vsub.s32 0, %v610
  %v612 = vrot.slane %v600, %v611
  %v613 = vlaneseq
  %v614 = vshrl.u32 %v613, 7
  %v615 = vsub.s32 1, %v614
  %v616 = vrot.slane %v600, %v615
  %v617 = vcombine.low %v604, %v608
  %v618 = vcombine.low %v612, %v616
  %v621 = vmul.f32 %v11, %v617
  %v622 = vmul.f32 %v12, %v618
  %623 = vst [vmem:[%s2] sm:$0xff] %v621
  %624 = vst [vmem:[%s2 + $0x8] sm:$0xff] %v622
  // Predicated region
  $region10: #{spatial_attention_forward.1} parent=0 // pred_check
    _
  $region11: #{spatial_attention_forward.1} parent=0 // pred_check_branch
    %626 = sbr.rel (0) target = $region13
  $region12: #{spatial_attention_forward.1} parent=0 // pred_region
    _
  $region13: #{spatial_attention_forward.1} parent=0 // pred_fallthru
    _
  // Predicated region
  $region14: #{spatial_attention_forward.1} parent=0 // pred_check
    _
  $region15: #{spatial_attention_forward.1} parent=0 // pred_check_branch
    %628 = sbr.rel (0) target = $region17
  $region16: #{spatial_attention_forward.1} parent=0 // pred_region
    _
  $region17: #{spatial_attention_forward.1} parent=0 // pred_fallthru
    _

</llo_original>
